<compile_context>
chip_gen: v6e
topology: v6e:2x2x1
jax: 0.10.0
libtpu: 0.0.40
codegen_flags: <defaults>
</compile_context>

<pallas_src>
import jax
import jax.numpy as jnp
from jax.experimental import pallas as pl
from jax.experimental.pallas import tpu as pltpu

LANE = 128
SUBLANE = 8

# Largest row count handled as one block: 4096 * 128 * 4 B = 2 MiB per operand.
_SINGLE_BLOCK_MAX_ROWS = 4096
# Tile rows for the large-N tiled reduction path (2 MiB / operand / buffer;
# 2 operands x 2 double-buffers x 2 MiB = 8 MiB, under every chip's scoped VMEM).
_TILE_ROWS = 4096


def _to_f32(x):
    return x if x.dtype == jnp.float32 else x.astype(jnp.float32)


def _distance_loss_single_kernel(pm_ref, sa_ref, out_ref):
    # Whole problem in one block: multiply, reduce, clamp, log.
    prod = _to_f32(pm_ref[...]) * _to_f32(sa_ref[...])
    s = jnp.sum(prod, keepdims=True)          # (1, 1)
    s = jnp.maximum(s, 1.0)                   # dist_loss[dist_loss <= 1] = 1
    out_ref[...] = jnp.log(s)


def _distance_loss_tiled_kernel(pm_ref, sa_ref, out_ref, acc_ref):
    i = pl.program_id(0)

    @pl.when(i == 0)
    def _():
        acc_ref[...] = jnp.zeros_like(acc_ref)

    prod = _to_f32(pm_ref[...]) * _to_f32(sa_ref[...])      # (tr, LANE)
    tr = prod.shape[0]
    # VPU-only accumulation into an (8, 128) vector accumulator; the reshape
    # does not cross (8,128) tile boundaries, so this lowers to elementwise adds.
    acc_ref[...] += prod.reshape(tr // SUBLANE, SUBLANE, LANE).sum(axis=0)

    @pl.when(i == pl.num_programs(0) - 1)
    def _():
        # Single cross-lane reduction at the very end.
        s = jnp.sum(acc_ref[...], keepdims=True)  # (1, 1)
        s = jnp.maximum(s, 1.0)
        out_ref[...] = jnp.log(s)


def _pad_and_fold(x, row_multiple):
    """Flatten, zero-pad (sum-preserving) and fold into a lane-dense 2D slab."""
    flat = x.reshape(-1)
    n = flat.shape[0]
    block = row_multiple * LANE
    pad = (-n) % block
    if pad:
        flat = jnp.pad(flat, (0, pad))
    rows = (n + pad) // LANE
    return flat.reshape(rows, LANE)


@jax.jit
def distance_loss(pm, sattn):
    assert pm.shape == sattn.shape
    n = pm.size  # static under jit

    cost = pl.CostEstimate(flops=2 * n + 1, transcendentals=1,
                           bytes_accessed=8 * n + 4)

    n_rows = pl.cdiv(n, LANE)  # static python int

    if n_rows <= _SINGLE_BLOCK_MAX_ROWS:
        # ---- small path: one grid step, no scratch, no pl.when --------------
        pm2 = _pad_and_fold(pm, SUBLANE)
        sa2 = _pad_and_fold(sattn, SUBLANE)
        rows = pm2.shape[0]
        out = pl.pallas_call(
            _distance_loss_single_kernel,
            out_shape=jax.ShapeDtypeStruct((1, 1), jnp.float32),
            grid=(1,),
            in_specs=[
                pl.BlockSpec((rows, LANE), lambda i: (0, 0)),
                pl.BlockSpec((rows, LANE), lambda i: (0, 0)),
            ],
            out_specs=pl.BlockSpec((1, 1), lambda i: (0, 0)),
            cost_estimate=cost,
        )(pm2, sa2)
    else:
        # ---- large-N path: big tiles, vector accumulator, final reduce ------
        # TODO(synk): on v7x a leading "parallel" grid axis over the two
        # TensorCores (partial sums combined in the wrapper) could ~2x this.
        pm2 = _pad_and_fold(pm, _TILE_ROWS)
        sa2 = _pad_and_fold(sattn, _TILE_ROWS)
        rows = pm2.shape[0]
        grid = (rows // _TILE_ROWS,)
        out = pl.pallas_call(
            _distance_loss_tiled_kernel,
            out_shape=jax.ShapeDtypeStruct((1, 1), jnp.float32),
            grid_spec=pltpu.PrefetchScalarGridSpec(
                num_scalar_prefetch=0,
                grid=grid,
                in_specs=[
                    pl.BlockSpec((_TILE_ROWS, LANE), lambda i: (i, 0)),
                    pl.BlockSpec((_TILE_ROWS, LANE), lambda i: (i, 0)),
                ],
                out_specs=pl.BlockSpec((1, 1), lambda i: (0, 0)),
                scratch_shapes=[pltpu.VMEM((SUBLANE, LANE), jnp.float32)],
            ),
            compiler_params=pltpu.CompilerParams(
                dimension_semantics=("arbitrary",),  # reduction axis (accumulator)
                vmem_limit_bytes=32 << 20,           # explicit for v5e's 16 MiB default
            ),
            cost_estimate=cost,
        )(pm2, sa2)

    return out[0, 0]


if __name__ == "__main__":
    key = jax.random.PRNGKey(0)
    k1, k2 = jax.random.split(key)
    # small shapes consistent with an attention/probability-map product
    pm = jax.random.uniform(k1, (2, 4, 16, 16), dtype=jnp.float32)
    sattn = jax.random.uniform(k2, (2, 4, 16, 16), dtype=jnp.float32)

    ld = distance_loss(pm, sattn)
    ld = jax.block_until_ready(ld)

    # pure-JAX reference
    ref = jnp.log(jnp.maximum(jnp.sum(pm * sattn), 1.0))
    assert jnp.allclose(ld, ref, rtol=1e-5, atol=1e-5), (ld, ref)

    print("KERNEL_OK")
</pallas_src>

<mosaic_0001>
module attributes {stable_mosaic.version = 11 : i64} {
  func.func @_distance_loss_single_kernel(%arg0: i32, %arg1: memref<16x128xf32, #tpu.memory_space<vmem>>, %arg2: memref<16x128xf32, #tpu.memory_space<vmem>>, %arg3: memref<1x1xf32, #tpu.memory_space<vmem>>) attributes {dimension_semantics = [#tpu.dimension_semantics<arbitrary>], iteration_bounds = array<i64: 1>, scalar_prefetch = 0 : i64, scratch_operands = 0 : i64, tpu.core_type = #tpu.core_type<tc>, window_params = [{pipeline_mode = #tpu.pipeline_mode<synchronous>, transform_indices = @transform_0, window_bounds = array<i64: 16, 128>}, {pipeline_mode = #tpu.pipeline_mode<synchronous>, transform_indices = @transform_1, window_bounds = array<i64: 16, 128>}, {pipeline_mode = #tpu.pipeline_mode<synchronous>, transform_indices = @transform_2, window_bounds = array<i64: 1, 1>}]} {
    %c0 = arith.constant 0 : index
    %c0_0 = arith.constant 0 : index
    %0 = vector.load %arg1[%c0, %c0_0] : memref<16x128xf32, #tpu.memory_space<vmem>>, vector<16x128xf32>
    %c0_1 = arith.constant 0 : index
    %c0_2 = arith.constant 0 : index
    %1 = vector.load %arg2[%c0_1, %c0_2] : memref<16x128xf32, #tpu.memory_space<vmem>>, vector<16x128xf32>
    %2 = arith.mulf %0, %1 : vector<16x128xf32>
    %3 = vector.shape_cast %2 : vector<16x128xf32> to vector<1x16x128xf32>
    %cst = arith.constant dense<0.000000e+00> : vector<1xf32>
    %4 = vector.multi_reduction <add>, %3, %cst [1, 2] : vector<1x16x128xf32> to vector<1xf32>
    %5 = vector.shape_cast %4 : vector<1xf32> to vector<1x1x1xf32>
    %6 = vector.extract %5[0, 0, 0] : f32 from vector<1x1x1xf32>
    %7 = vector.broadcast %6 : f32 to vector<1x1xf32>
    %cst_3 = arith.constant 1.000000e+00 : f32
    %8 = vector.broadcast %cst_3 : f32 to vector<1x1xf32>
    %9 = arith.maximumf %7, %8 : vector<1x1xf32>
    %10 = math.log %9 : vector<1x1xf32>
    %c0_4 = arith.constant 0 : index
    %c0_5 = arith.constant 0 : index
    %11 = vector.load %arg3[%c0_4, %c0_5] : memref<1x1xf32, #tpu.memory_space<vmem>>, vector<1x1xf32>
    tpu.vector_store %arg3[%c0_4, %c0_5], %10 {strides = array<i32>} : memref<1x1xf32, #tpu.memory_space<vmem>>, vector<1x1xf32>,
    return
  }
  func.func @transform_0(%arg0: i32) -> (i32, i32) {
    %c0_i32 = arith.constant 0 : i32
    %c0_i32_0 = arith.constant 0 : i32
    %c0_i32_1 = arith.constant 0 : i32
    return %c0_i32, %c0_i32_0 : i32, i32
  }
  func.func @transform_1(%arg0: i32) -> (i32, i32) {
    %c0_i32 = arith.constant 0 : i32
    %c0_i32_0 = arith.constant 0 : i32
    %c0_i32_1 = arith.constant 0 : i32
    return %c0_i32, %c0_i32_0 : i32, i32
  }
  func.func @transform_2(%arg0: i32) -> (i32, i32) {
    %c0_i32 = arith.constant 0 : i32
    %c0_i32_0 = arith.constant 0 : i32
    %c0_i32_1 = arith.constant 0 : i32
    return %c0_i32, %c0_i32_0 : i32, i32
  }
}

</mosaic_0001>

<llo_original>
// kernel: distance_loss.1
$region0: #{distance_loss.1}
  #allocation0 [shape = 'u32[]', space=smem, size = 0x4, offset = 0x4, fixed_abs, tag = 'smem constant byte address 0x4 - core index']
  #allocation1 [shape = 'u32[144,128]{1,0:T(1,128)}', space=vmem, size = 0x12000, scoped, tag = 'internal scratch']
  %s0 = inlined_call_operand.vmem [shape: f32[16,128], index: 0, kind: input, shape index: {}]
  %s1 = inlined_call_operand.vmem [shape: f32[16,128], index: 1, kind: input, shape index: {}]
  %s2 = inlined_call_operand.hbm [shape: f32[1,1], index: 2, kind: output, shape index: {}]
  %s3 = sld [smem:[#allocation0]]
  $region18: #{distance_loss.1} parent=0
    _
  %s5 = ssub.s32 1, %s3
  %s6 = scalar_select 0, %s5, %s3
  $region1: #{distance_loss.1} parent=0
    #allocation2 [shape = 'u8[512]{0}', space=vmem, size = 0x400, scoped, tag = 'output window, operand 0, single buffered']
    #allocation3 [shape = 's32[1]{0}', space=sflag, size = 0x4, scoped, tag = 'scoped memory for distance_loss.1']
    %7 = vsyncpa [#allocation3], 0
    // Predicated region
    $region2: #{distance_loss.1} parent=1 // pred_check
      _
    $region3: #{distance_loss.1} parent=1 // pred_check_branch
      %9 = sbr.rel (0) target = $region5
    $region4: #{distance_loss.1} parent=1 // pred_region
      _
    $region5: #{distance_loss.1} parent=1 // pred_fallthru
      _
    // Predicated region
    $region6: #{distance_loss.1} parent=1 // pred_check
      _
    $region7: #{distance_loss.1} parent=1 // pred_check_branch
      %11 = sbr.rel (0) target = $region9
    $region8: #{distance_loss.1} parent=1 // pred_region
      _
    $region9: #{distance_loss.1} parent=1 // pred_fallthru
      _
    %v12 = vld [vmem:[%s0] sm:$0xff]
    %v13 = vld [vmem:[%s0 + $0x8] sm:$0xff]
    %v14 = vld [vmem:[%s1] sm:$0xff]
    %v15 = vld [vmem:[%s1 + $0x8] sm:$0xff]
    %v16 = vmul.f32 %v12, %v14
    %v17 = vmul.f32 %v13, %v15
    %v18 = vadd.f32 %v16, %v17
    %19 = vadd.xlane.f32.xlu0 %v18
    %v20 = vpop.xlane.xlu0 %19
    %v21 = vrot.slane %v20, 4
    %v22 = vadd.f32 %v20, %v21
    %v23 = vrot.slane %v22, 2
    %v24 = vadd.f32 %v22, %v23
    %v25 = vrot.slane %v24, 1
    %v26 = vadd.f32 %v24, %v25
    %s27 = vtos %v26
    %v28 = vstv %s27
    %v29 = vmax.f32 %v28, 1.0
    %v30 = vlog2.pop %v29
    %v31 = vmul.f32 %v30, 0.6931472
    %vm32 = vcmask 0
    %33 = vst.msk [vmem:[#allocation2] sm:$0x1] %vm32, %v31
    // Predicated region
    $region10: #{distance_loss.1} parent=1 // pred_check
      _
    $region11: #{distance_loss.1} parent=1 // pred_check_branch
      %35 = sbr.rel (0) target = $region13
    $region12: #{distance_loss.1} parent=1 // pred_region
      %s37 = ssub.s32 16, 16
      %38 = vsyncadd [#allocation3], %s37
      %s40 = sshll.u32 [#allocation2], 4
      %s41 = int_to_ptr.vmem [resolvable:$true] %s40
      %43 = dma.vmem_to_hbm [thread:$0]  %s41, 16, %s2, [#allocation3]
    $region13: #{distance_loss.1} parent=1 // pred_fallthru
      _
    // Predicated region
    $region14: #{distance_loss.1} parent=1 // pred_check
      _
    $region15: #{distance_loss.1} parent=1 // pred_check_branch
      %45 = sbr.rel (0) target = $region17
    $region16: #{distance_loss.1} parent=1 // pred_region
      %46 = dma.done [#allocation3], 16
    $region17: #{distance_loss.1} parent=1 // pred_fallthru
      _
    %47 = vsyncpa [#allocation3], 1

</llo_original>
